<compile_context>
chip_gen: v7x
topology: tpu7x:2x2x1
jax: 0.10.0
libtpu: 0.0.40
codegen_flags: <defaults>
</compile_context>

<pallas_src>
import functools

import jax
import jax.numpy as jnp
from jax import lax
from jax.experimental import pallas as pl
from jax.experimental.pallas import tpu as pltpu


_ROW_CHUNK = 256        # pillars per in-kernel matmul chunk (bounds live vregs)
_MAX_TILE_LAST = 8192   # pillars per grid step when reducing over points
_MAX_TILE_FULL = 4096   # pillars per grid step when emitting per-point feats


def _round_up(x, m):
    return (x + m - 1) // m * m


def _choose_tile(n, max_tile):
    """Pillars per grid step: multiple of 8, always <= n, >= 2 grid steps when
    there is enough work (v7x megacore), minimal ragged-edge waste."""
    if n <= 8:
        return max(n, 1)
    g = max(2, pl.cdiv(n, max_tile))
    if g % 2:
        g += 1                       # even grid -> both v7x TensorCores busy
    return _round_up(pl.cdiv(n, g), 8)


def _fold_max_over_points(y, p, cout):
    """(rows, P*Cout) -> (rows, Cout): elementwise max over the P groups."""
    if (p & (p - 1)) == 0:           # power of two: halving tree, first split
        m = y                        # is full-vreg (128-lane) aligned
        width = p * cout
        while width > cout:
            width //= 2
            m = jnp.maximum(m[:, :width], m[:, width:])
        return m
    m = y[:, :cout]
    for pi in range(1, p):
        m = jnp.maximum(m, y[:, pi * cout:(pi + 1) * cout])
    return m


# ----------------------------- Pallas kernel --------------------------------

def _rfn_kernel(x_ref, w_ref, shift_ref, o_ref, *, n_points, out_units,
                last_vfe, row_chunk):
    """One pillar tile of RFNLayer.

    x_ref     : (tile, P*Cin)          point features, natural row-major layout
    w_ref     : (P*Cin, P*Cout) bf16   block-diagonal BN-folded weight (resident)
    shift_ref : (1, P*Cout)     f32    folded BN shift, tiled per point
    o_ref     : (tile, Cout)           (last_vfe)   max over points
                (tile, P*Cout)         (otherwise)  full per-point activation
    """
    tile = x_ref.shape[0]
    w = w_ref[...]                     # small; stays resident across grid steps
    shift = shift_ref[...]

    def process(c0, rows):
        xb = x_ref[pl.ds(c0, rows), :].astype(w.dtype)
        y = jnp.dot(xb, w, preferred_element_type=jnp.float32)
        y = jnp.maximum(y + shift, 0.0)                  # folded BN shift + ReLU
        if last_vfe:
            y = _fold_max_over_points(y, n_points, out_units)
        o_ref[pl.ds(c0, rows), :] = y.astype(o_ref.dtype)

    num_full = tile // row_chunk
    rem = tile - num_full * row_chunk
    if num_full == 1:
        process(0, row_chunk)
    elif num_full > 1:
        # fori_loop (not an unrolled Python loop) gives the compiler a real
        # live-range boundary per chunk -> bounded vreg pressure.
        def body(i, carry):
            c0 = pl.multiple_of(i * row_chunk, 8)
            process(c0, row_chunk)
            return carry
        lax.fori_loop(0, num_full, body, 0)
    if rem:
        process(num_full * row_chunk, rem)               # static tail


# ------------------------------- wrapper -------------------------------------

def rfn_layer_forward(inputs, weight, gamma, beta, running_mean, running_var,
                      *, eps=1e-3, last_vfe=True, out_dtype=jnp.float32,
                      compute_dtype=jnp.bfloat16):
    """RFNLayer forward: Linear(bias=False) -> BN1d(eval) -> ReLU [-> max over P].

    inputs : (N, P, Cin)   (pillars, points-per-pillar, point features)
    weight : (Cout, Cin)   (PyTorch nn.Linear weight layout)
    returns: (N, 1, Cout) if last_vfe else (N, P, Cout), dtype `out_dtype`.
    """
    n, p, cin = inputs.shape
    cout = weight.shape[0]

    if n == 0:  # empty frame guard
        shape = (0, 1, cout) if last_vfe else (0, p, cout)
        return jnp.zeros(shape, out_dtype)

    # Fold eval-mode BN into the linear weight (scale) and a per-channel shift.
    scale = gamma * lax.rsqrt(running_var + eps)                   # (Cout,)
    w_t = (weight * scale[:, None]).T.astype(compute_dtype)        # (Cin, Cout)
    shift = (beta - running_mean * scale).astype(jnp.float32)      # (Cout,)

    # Block-diagonal folded weight: one (rows, P*Cin) @ (P*Cin, P*Cout) MXU dot
    # per chunk replaces P tiny K=Cin dots.  Exact (off-diagonal terms are 0).
    w_bd = jnp.kron(jnp.eye(p, dtype=compute_dtype), w_t)          # (P*Cin, P*Cout)
    shift_bd = jnp.tile(shift, p).reshape(1, p * cout)             # (1, P*Cout)

    # Natural layout: (N, P, Cin) -> (N, P*Cin) is a free reshape; no wrapper
    # transpose / pad / cast passes.  The ragged last grid block is handled by
    # Pallas (garbage padded reads, out-of-bounds writes dropped); rows are
    # independent so garbage never contaminates valid output rows.
    k = p * cin
    x2d = inputs.reshape(n, k)

    out_cols = cout if last_vfe else p * cout
    max_tile = _MAX_TILE_LAST if last_vfe else _MAX_TILE_FULL
    tile = _choose_tile(n, max_tile)
    grid = (pl.cdiv(n, tile),)

    in_bytes = jnp.dtype(x2d.dtype).itemsize
    out_bytes = jnp.dtype(out_dtype).itemsize
    block_bytes = 2 * tile * (k * in_bytes + out_cols * out_bytes)  # dbl-buffered
    vmem_limit = int(min(64 << 20, max(32 << 20, 2 * block_bytes)))

    kernel = functools.partial(_rfn_kernel, n_points=p, out_units=cout,
                               last_vfe=last_vfe, row_chunk=_ROW_CHUNK)

    out2d = pl.pallas_call(
        kernel,
        out_shape=jax.ShapeDtypeStruct((n, out_cols), out_dtype),
        grid_spec=pltpu.PrefetchScalarGridSpec(
            num_scalar_prefetch=0,
            grid=grid,
            in_specs=[
                pl.BlockSpec((tile, k), lambda i: (i, 0)),         # feats
                pl.BlockSpec((k, p * cout), lambda i: (0, 0)),     # W_bd (resident)
                pl.BlockSpec((1, p * cout), lambda i: (0, 0)),     # BN shift
            ],
            out_specs=pl.BlockSpec((tile, out_cols), lambda i: (i, 0)),
        ),
        compiler_params=pltpu.CompilerParams(
            dimension_semantics=("parallel",),
            vmem_limit_bytes=vmem_limit,
        ),
    )(x2d, w_bd, shift_bd)

    if last_vfe:
        return out2d.reshape(n, 1, cout)      # free reshape
    return out2d.reshape(n, p, cout)          # free reshape


# ------------------ pure-JAX reference (same precision path) -----------------

def rfn_layer_reference(inputs, weight, gamma, beta, running_mean, running_var,
                        *, eps=1e-3, last_vfe=True,
                        compute_dtype=jnp.bfloat16):
    scale = gamma * lax.rsqrt(running_var + eps)
    w_folded = (weight * scale[:, None]).astype(compute_dtype)
    shift = beta - running_mean * scale
    y = jnp.einsum('npi,oi->npo', inputs.astype(compute_dtype), w_folded,
                   preferred_element_type=jnp.float32)
    y = jnp.maximum(y + shift, 0.0)
    if last_vfe:
        return jnp.max(y, axis=1, keepdims=True)
    return y


# ----------------------------------- main ------------------------------------

if __name__ == "__main__":
    key = jax.random.PRNGKey(0)
    k_x, k_w, k_g, k_b = jax.random.split(key, 4)

    N, P, CIN, COUT = 64, 8, 8, 32    # pillars, points/pillar, in/out channels

    inputs = jax.random.normal(k_x, (N, P, CIN), dtype=jnp.float32)
    weight = jax.random.normal(k_w, (COUT, CIN), dtype=jnp.float32) * 0.1
    gamma = 1.0 + 0.05 * jax.random.normal(k_g, (COUT,), dtype=jnp.float32)
    beta = 0.05 * jax.random.normal(k_b, (COUT,), dtype=jnp.float32)
    running_mean = jnp.zeros((COUT,), dtype=jnp.float32)
    running_var = jnp.ones((COUT,), dtype=jnp.float32)

    # last_vfe=True branch (the usual PFN "last layer" configuration).
    out_max = rfn_layer_forward(inputs, weight, gamma, beta,
                                running_mean, running_var, last_vfe=True)
    out_max = jax.block_until_ready(out_max)
    assert out_max.shape == (N, 1, COUT)
    ref_max = rfn_layer_reference(inputs, weight, gamma, beta,
                                  running_mean, running_var, last_vfe=True)
    assert jnp.allclose(out_max, ref_max, atol=2e-3, rtol=2e-3), \
        float(jnp.max(jnp.abs(out_max - ref_max)))

    # last_vfe=False branch (per-point features are returned).
    out_full = rfn_layer_forward(inputs, weight, gamma, beta,
                                 running_mean, running_var, last_vfe=False)
    out_full = jax.block_until_ready(out_full)
    assert out_full.shape == (N, P, COUT)
    ref_full = rfn_layer_reference(inputs, weight, gamma, beta,
                                   running_mean, running_var, last_vfe=False)
    assert jnp.allclose(out_full, ref_full, atol=2e-3, rtol=2e-3), \
        float(jnp.max(jnp.abs(out_full - ref_full)))

    print("KERNEL_OK")
</pallas_src>

<mosaic_0001>
module attributes {stable_mosaic.version = 11 : i64} {
  func.func @_rfn_kernel(%arg0: i32, %arg1: memref<32x64xf32, #tpu.memory_space<vmem>>, %arg2: memref<64x256xbf16, #tpu.memory_space<vmem>>, %arg3: memref<1x256xf32, #tpu.memory_space<vmem>>, %arg4: memref<32x32xf32, #tpu.memory_space<vmem>>) attributes {dimension_semantics = [#tpu.dimension_semantics<parallel>], iteration_bounds = array<i64: 2>, scalar_prefetch = 0 : i64, scratch_operands = 0 : i64, tpu.core_type = #tpu.core_type<tc>, window_params = [{transform_indices = @transform_0, window_bounds = array<i64: 32, 64>}, {pipeline_mode = #tpu.pipeline_mode<synchronous>, transform_indices = @transform_1, window_bounds = array<i64: 64, 256>}, {pipeline_mode = #tpu.pipeline_mode<synchronous>, transform_indices = @transform_2, window_bounds = array<i64: 1, 256>}, {transform_indices = @transform_3, window_bounds = array<i64: 32, 32>}]} {
    %c0 = arith.constant 0 : index
    %c0_0 = arith.constant 0 : index
    %0 = vector.load %arg2[%c0, %c0_0] : memref<64x256xbf16, #tpu.memory_space<vmem>>, vector<64x256xbf16>
    %c0_1 = arith.constant 0 : index
    %c0_2 = arith.constant 0 : index
    %1 = vector.load %arg3[%c0_1, %c0_2] : memref<1x256xf32, #tpu.memory_space<vmem>>, vector<1x256xf32>
    %c0_3 = arith.constant 0 : index
    %c0_4 = arith.constant 0 : index
    %2 = vector.load %arg1[%c0_3, %c0_4] : memref<32x64xf32, #tpu.memory_space<vmem>>, vector<32x64xf32>
    %3 = arith.truncf %2 : vector<32x64xf32> to vector<32x64xbf16>
    %cst = arith.constant dense<0.000000e+00> : vector<32x256xf32>
    %4 = tpu.matmul %3, %0, %cst {dimension_numbers = #tpu.dot_dimension_numbers<[1], [0], [0], [1], [0, 0, 1, 1], [], []>} : vector<32x64xbf16>, vector<64x256xbf16>, vector<32x256xf32> -> vector<32x256xf32>
    %5 = vector.broadcast %1 : vector<1x256xf32> to vector<32x256xf32>
    %6 = arith.addf %4, %5 : vector<32x256xf32>
    %cst_5 = arith.constant 0.000000e+00 : f32
    %7 = vector.broadcast %cst_5 : f32 to vector<32x256xf32>
    %8 = arith.maximumf %6, %7 : vector<32x256xf32>
    %9 = vector.extract_strided_slice %8 {offsets = [0, 0], sizes = [32, 128], strides = [1, 1]} : vector<32x256xf32> to vector<32x128xf32>
    %10 = vector.extract_strided_slice %8 {offsets = [0, 128], sizes = [32, 128], strides = [1, 1]} : vector<32x256xf32> to vector<32x128xf32>
    %11 = arith.maximumf %9, %10 : vector<32x128xf32>
    %12 = vector.extract_strided_slice %11 {offsets = [0, 0], sizes = [32, 64], strides = [1, 1]} : vector<32x128xf32> to vector<32x64xf32>
    %13 = vector.extract_strided_slice %11 {offsets = [0, 64], sizes = [32, 64], strides = [1, 1]} : vector<32x128xf32> to vector<32x64xf32>
    %14 = arith.maximumf %12, %13 : vector<32x64xf32>
    %15 = vector.extract_strided_slice %14 {offsets = [0, 0], sizes = [32, 32], strides = [1, 1]} : vector<32x64xf32> to vector<32x32xf32>
    %16 = vector.extract_strided_slice %14 {offsets = [0, 32], sizes = [32, 32], strides = [1, 1]} : vector<32x64xf32> to vector<32x32xf32>
    %17 = arith.maximumf %15, %16 : vector<32x32xf32>
    %c0_6 = arith.constant 0 : index
    %c0_7 = arith.constant 0 : index
    %18 = vector.load %arg4[%c0_6, %c0_7] : memref<32x32xf32, #tpu.memory_space<vmem>>, vector<32x32xf32>
    tpu.vector_store %arg4[%c0_6, %c0_7], %17 {strides = array<i32>} : memref<32x32xf32, #tpu.memory_space<vmem>>, vector<32x32xf32>,
    return
  }
  func.func @transform_0(%arg0: i32) -> (i32, i32) {
    %c0_i32 = arith.constant 0 : i32
    %c0_i32_0 = arith.constant 0 : i32
    return %arg0, %c0_i32 : i32, i32
  }
  func.func @transform_1(%arg0: i32) -> (i32, i32) {
    %c0_i32 = arith.constant 0 : i32
    %c0_i32_0 = arith.constant 0 : i32
    %c0_i32_1 = arith.constant 0 : i32
    return %c0_i32, %c0_i32_0 : i32, i32
  }
  func.func @transform_2(%arg0: i32) -> (i32, i32) {
    %c0_i32 = arith.constant 0 : i32
    %c0_i32_0 = arith.constant 0 : i32
    %c0_i32_1 = arith.constant 0 : i32
    return %c0_i32, %c0_i32_0 : i32, i32
  }
  func.func @transform_3(%arg0: i32) -> (i32, i32) {
    %c0_i32 = arith.constant 0 : i32
    %c0_i32_0 = arith.constant 0 : i32
    return %arg0, %c0_i32 : i32, i32
  }
}

</mosaic_0001>

<llo_original>
// kernel: tpu_custom_call.1
$region0: #{tpu_custom_call.1}
  #allocation0 [shape = 'u32[]', space=smem, size = 0x4, offset = 0x4, fixed_abs, tag = 'smem constant byte address 0x4 - core index']
  #allocation1 [shape = 'u32[144,128]{1,0:T(1,128)}', space=vmem, size = 0x12000, scoped, tag = 'internal scratch']
  %s0 = inlined_call_operand.hbm [shape: f32[64,64], index: 0, kind: input, shape index: {}]
  %s1 = inlined_call_operand.hbm [shape: bf16[64,256], index: 1, kind: input, shape index: {}]
  %s2 = inlined_call_operand.vmem [shape: f32[1,256], index: 2, kind: input, shape index: {}]
  %s3 = inlined_call_operand.vmem [shape: f32[64,32], index: 3, kind: output, shape index: {}]
  %s4 = sld [smem:[#allocation0]]
  $region53: #{tpu_custom_call.1} parent=0
    _
  %s6 = ssub.s32 1, %s4
  %s7 = scalar_select 0, %s6, %s4
  $region1: #{tpu_custom_call.1} parent=0
    #allocation2 [shape = 'u8[32768]{0}', space=vmem, size = 0x8000, scoped, tag = 'input window, operand 0']
    #allocation3 [shape = 's32[2]{0}', space=sflag, size = 0x8, scoped, tag = 'scoped memory for tpu_custom_call.1']
    #allocation4 [shape = 'u8[32768]{0}', space=vmem, size = 0x8000, scoped, tag = 'input window, operand 1, single buffered']
    #allocation5 [shape = 's32[1]{0}', space=sflag, size = 0x4, scoped, tag = 'scoped memory for tpu_custom_call.1']
    %8 = vsyncpa [#allocation3], 0
    %s9 = scalar_lea.sflag [#allocation3], 1
    %10 = vsyncpa %s9, 0
    %11 = vsyncpa [#allocation5], 0
    loop: start=0, step=1, limit=4
    $region2: #{tpu_custom_call.1} parent=1 // loop_pre_header
      _
    $region3: #{tpu_custom_call.1} parent=1 // loop_header
      %s13 = sphi 0, %s17
      %p14 = scmp.ge.s32.totalorder %s13, 4
      %s23 = sphi 0, %s25
      %s26 = sphi 0, %s23
      %s27 = sphi 0, %s26
      %s43 = sphi 0, %s27
      %s47 = sphi 0, %s47
      %s49 = sphi 0, %s47
      %s50 = sphi 0, %s49
      %s64 = sphi 0, %s50
      %s68 = sphi 0, %s68
      %s70 = sphi 0, %s68
      %s71 = sphi 0, %s70
      %s85 = sphi 0, %s71
      %s91 = sphi 0, %s93
      %s94 = sphi 0, %s91
      %s95 = sphi 0, %s94
      %s111 = sphi 0, %s95
    $region4: #{tpu_custom_call.1} parent=1 // loop_header_branch
      %16 = sbr.rel (%p14) target = $region8
    $region5: #{tpu_custom_call.1} parent=1 // loop_body
      %s18 = ssub.s32 %s13, 1
      %s19 = ssub.s32 %s13, 2
      %s20 = sadd.s32 %s13, 1
      %s21 = ssub.s32 %s13, %s20
      %p22 = scmp.eq.s32.totalorder %s21, 0
      %s24 = sadd.s32 %s23, 1
      %s25 = scalar_select %p22, %s23, %s24
      %p28 = pneg %p22
      %p29 = scmp.eq.s32.totalorder %s13, 1
      %p30 = por %p28, %p29
      %p31 = scmp.ne.s32.totalorder %s23, %s26
      %p32 = scmp.eq.s32.totalorder %s13, 0
      %p33 = por %p31, %p32
      %p34 = scmp.ne.s32.totalorder %s23, %s26
      %p35 = scmp.eq.s32.totalorder %s18, 1
      %p36 = por %p34, %p35
      %p37 = scmp.ne.s32.totalorder %s26, %s27
      %p38 = scmp.eq.s32.totalorder %s18, 0
      %p39 = por %p37, %p38
      %p40 = scmp.ne.s32.totalorder %s26, %s27
      %p41 = scmp.eq.s32.totalorder %s19, 1
      %p42 = por %p40, %p41
      %p44 = scmp.ne.s32.totalorder %s27, %s43
      %p45 = scmp.eq.s32.totalorder %s19, 0
      %p46 = por %p44, %p45
      %s48 = sadd.s32 %s47, 1
      %p51 = scmp.eq.s32.totalorder %s13, 1
      %p52 = scmp.ne.s32.totalorder %s47, %s49
      %p53 = scmp.eq.s32.totalorder %s13, 0
      %p54 = por %p52, %p53
      %p55 = scmp.ne.s32.totalorder %s47, %s49
      %p56 = scmp.eq.s32.totalorder %s18, 1
      %p57 = por %p55, %p56
      %p58 = scmp.ne.s32.totalorder %s49, %s50
      %p59 = scmp.eq.s32.totalorder %s18, 0
      %p60 = por %p58, %p59
      %p61 = scmp.ne.s32.totalorder %s49, %s50
      %p62 = scmp.eq.s32.totalorder %s19, 1
      %p63 = por %p61, %p62
      %p65 = scmp.ne.s32.totalorder %s50, %s64
      %p66 = scmp.eq.s32.totalorder %s19, 0
      %p67 = por %p65, %p66
      %s69 = sadd.s32 %s68, 1
      %p72 = scmp.eq.s32.totalorder %s13, 1
      %p73 = scmp.ne.s32.totalorder %s68, %s70
      %p74 = scmp.eq.s32.totalorder %s13, 0
      %p75 = por %p73, %p74
      %p76 = scmp.ne.s32.totalorder %s68, %s70
      %p77 = scmp.eq.s32.totalorder %s18, 1
      %p78 = por %p76, %p77
      %p79 = scmp.ne.s32.totalorder %s70, %s71
      %p80 = scmp.eq.s32.totalorder %s18, 0
      %p81 = por %p79, %p80
      %p82 = scmp.ne.s32.totalorder %s70, %s71
      %p83 = scmp.eq.s32.totalorder %s19, 1
      %p84 = por %p82, %p83
      %p86 = scmp.ne.s32.totalorder %s71, %s85
      %p87 = scmp.eq.s32.totalorder %s19, 0
      %p88 = por %p86, %p87
      %s89 = ssub.s32 %s13, %s20
      %p90 = scmp.eq.s32.totalorder %s89, 0
      %s92 = sadd.s32 %s91, 1
      %s93 = scalar_select %p90, %s91, %s92
      %p96 = pneg %p90
      %p97 = scmp.eq.s32.totalorder %s13, 1
      %p98 = por %p96, %p97
      %p99 = scmp.ne.s32.totalorder %s91, %s94
      %p100 = scmp.eq.s32.totalorder %s13, 0
      %p101 = por %p99, %p100
      %p102 = scmp.ne.s32.totalorder %s91, %s94
      %p103 = scmp.eq.s32.totalorder %s18, 1
      %p104 = por %p102, %p103
      %p105 = scmp.ne.s32.totalorder %s94, %s95
      %p106 = scmp.eq.s32.totalorder %s18, 0
      %p107 = por %p105, %p106
      %p108 = scmp.ne.s32.totalorder %s94, %s95
      %p109 = scmp.eq.s32.totalorder %s19, 1
      %p110 = por %p108, %p109
      %p112 = scmp.ne.s32.totalorder %s95, %s111
      %p113 = scmp.eq.s32.totalorder %s19, 0
      %p114 = por %p112, %p113
      %p115 = scmp.le.s32.totalorder 1, %s13
      %p116 = scmp.lt.s32.totalorder %s13, 3
      %p117 = pnand %p115, %p116
      %p118 = pneg %p117
      // Predicated region
      $region9: #{tpu_custom_call.1} parent=5 // pred_check
        _
      $region10: #{tpu_custom_call.1} parent=5 // pred_check_branch
        %120 = sbr.rel (%p117) target = $region12
      $region11: #{tpu_custom_call.1} parent=5 // pred_region
        %s121 = ssub.s32 %s13, 1
        // Predicated region
        $region13: #{tpu_custom_call.1} parent=11 // pred_check
          %p122 = pneg %p60
        $region14: #{tpu_custom_call.1} parent=11 // pred_check_branch
          %124 = sbr.rel (%p122) target = $region16
        $region15: #{tpu_custom_call.1} parent=11 // pred_region
          %s126 = ssub.s32 1024, 1024
          %127 = vsyncadd [#allocation5], %s126
          %s128 = sshll.u32 [#allocation4], 4
          %s129 = int_to_ptr.vmem [resolvable:$true] %s128
          %134 = dma.hbm_to_vmem [thread:$0]  %s1, 1024, %s129, [#allocation5], 128, 128, 8
        $region16: #{tpu_custom_call.1} parent=11 // pred_fallthru
          _
        // Predicated region
        $region17: #{tpu_custom_call.1} parent=11 // pred_check
          %p135 = pneg %p81
        $region18: #{tpu_custom_call.1} parent=11 // pred_check_branch
          %137 = sbr.rel (%p135) target = $region20
        $region19: #{tpu_custom_call.1} parent=11 // pred_region
          _
        $region20: #{tpu_custom_call.1} parent=11 // pred_fallthru
          _
      $region12: #{tpu_custom_call.1} parent=5 // pred_fallthru
        _
      %p138 = scmp.lt.s32.totalorder %s13, 2
      // Predicated region
      $region21: #{tpu_custom_call.1} parent=5 // pred_check
        %p139 = pneg %p138
      $region22: #{tpu_custom_call.1} parent=5 // pred_check_branch
        %141 = sbr.rel (%p139) target = $region24
      $region23: #{tpu_custom_call.1} parent=5 // pred_region
        // Predicated region
        $region25: #{tpu_custom_call.1} parent=23 // pred_check
          %p142 = pneg %p33
        $region26: #{tpu_custom_call.1} parent=23 // pred_check_branch
          %144 = sbr.rel (%p142) target = $region28
        $region27: #{tpu_custom_call.1} parent=23 // pred_region
          %s145 = sand.u32 %s23, 1
          %s146 = scalar_lea.sflag [#allocation3], %s145
          %s147 = sand.u32 %s23, 1
          %s148 = smul.addr %s147, 32
          %s149 = scalar_lea.vmem [#allocation2], %s148
          %s150 = smul.u32 4, %s13
          %s152 = ssub.s32 512, 512
          %153 = vsyncadd %s146, %s152
          %s154 = smul.addr %s150, 128
          %s155 = scalar_lea.hbm %s0, %s154
          %s156 = sshll.u32 %s149, 4
          %s157 = int_to_ptr.vmem [resolvable:$true] %s156
          %162 = dma.hbm_to_vmem [thread:$0]  %s155, 512, %s157, %s146, 128, 128, 8
        $region28: #{tpu_custom_call.1} parent=23 // pred_fallthru
          _
      $region24: #{tpu_custom_call.1} parent=5 // pred_fallthru
        _
      %p163 = scmp.le.s32.totalorder 1, %s13
      %p164 = scmp.lt.s32.totalorder %s13, 3
      %p165 = pnand %p163, %p164
      %p166 = pneg %p165
      // Predicated region
      $region29: #{tpu_custom_call.1} parent=5 // pred_check
        _
      $region30: #{tpu_custom_call.1} parent=5 // pred_check_branch
        %168 = sbr.rel (%p165) target = $region32
      $region31: #{tpu_custom_call.1} parent=5 // pred_region
        %s169 = ssub.s32 %s13, 1
        %s170 = sand.u32 %s26, 1
        %s171 = scalar_lea.sflag [#allocation3], %s170
        %s172 = sand.u32 %s26, 1
        %s173 = smul.addr %s172, 32
        %s174 = scalar_lea.vmem [#allocation2], %s173
        // Predicated region
        $region33: #{tpu_custom_call.1} parent=31 // pred_check
          %p175 = pneg %p39
        $region34: #{tpu_custom_call.1} parent=31 // pred_check_branch
          %177 = sbr.rel (%p175) target = $region36
        $region35: #{tpu_custom_call.1} parent=31 // pred_region
          %178 = dma.done %s171, 512
        $region36: #{tpu_custom_call.1} parent=31 // pred_fallthru
          _
        // Predicated region
        $region37: #{tpu_custom_call.1} parent=31 // pred_check
          %p179 = pneg %p60
        $region38: #{tpu_custom_call.1} parent=31 // pred_check_branch
          %181 = sbr.rel (%p179) target = $region40
        $region39: #{tpu_custom_call.1} parent=31 // pred_region
          %182 = dma.done [#allocation5], 1024
        $region40: #{tpu_custom_call.1} parent=31 // pred_fallthru
          _
        %s183 = sand.u32 %s26, 1
        %s184 = scalar_lea.sflag [#allocation3], %s183
        %s185 = sand.u32 %s26, 1
        %s186 = smul.addr %s185, 32
        %s187 = scalar_lea.vmem [#allocation2], %s186
        %p188 = pneg %p39
        %p189 = pneg %p36
        %p190 = pneg %p60
        %p191 = pneg %p57
        %p192 = pneg %p81
        %p193 = pneg %p78
        %p194 = pneg %p107
        %p195 = pneg %p104
        %s196 = smul.u32 4, %s18
        %p197 = scmp.lt.s32.totalorder %s196, 7
        %s198 = scalar_select %p197, %s196, 7
        %s199 = smul.addr %s198, 8
        %s200 = scalar_lea.vmem %s3, %s199
        %s201 = smul.u32 4, %s18
        %s202 = smul.u32 4, %s18
        %p203 = scmp.lt.s32.totalorder %s202, 7
        %s204 = scalar_select %p203, %s202, 7
        %s205 = smul.addr %s204, 8
        %s206 = scalar_lea.vmem %s3, %s205
        %s207 = smul.u32 4, %s18
        %v209 = vld [vmem:[#allocation4] sm:$0xff]
        %v210 = vld [vmem:[#allocation4 + $0x8] sm:$0xff]
        %v211 = vld [vmem:[#allocation4 + $0x10] sm:$0xff]
        %v212 = vld [vmem:[#allocation4 + $0x18] sm:$0xff]
        %v213 = vld [vmem:[#allocation4 + $0x20] sm:$0xff]
        %v214 = vld [vmem:[#allocation4 + $0x28] sm:$0xff]
        %v215 = vld [vmem:[#allocation4 + $0x30] sm:$0xff]
        %v216 = vld [vmem:[#allocation4 + $0x38] sm:$0xff]
        %v217 = vld [vmem:[%s2] sm:$0x3]
        %v218 = vld [vmem:[%s174] sm:$0xff]
        %v219 = vld [vmem:[%s174 + $0x8] sm:$0xff]
        %v220 = vld [vmem:[%s174 + $0x10] sm:$0xff]
        %v221 = vld [vmem:[%s174 + $0x18] sm:$0xff]
        %v222 = vpack.c.bf16 %v219, %v218
        %v223 = vpack.c.bf16 %v221, %v220
        %v225 = vlaneseq
        %v226 = vshrl.u32 %v225, 7
        %v227 = vsub.s32 0, %v226
        %v228 = vrot.slane %v217, %v227
        %v229 = vlaneseq
        %v230 = vshrl.u32 %v229, 7
        %v231 = vsub.s32 1, %v230
        %v232 = vrot.slane %v217, %v231
        %v243 = vunpack.c.l.b16 %v209
        %v244 = vunpack.c.h.b16 %v209
        %v245 = vunpack.c.l.b16 %v210
        %v246 = vunpack.c.h.b16 %v210
        %v247 = vunpack.c.l.b16 %v211
        %v248 = vunpack.c.h.b16 %v211
        %v249 = vunpack.c.l.b16 %v212
        %v250 = vunpack.c.h.b16 %v212
        %v251 = vunpack.c.l.b16 %v213
        %v252 = vunpack.c.h.b16 %v213
        %v253 = vunpack.c.l.b16 %v214
        %v254 = vunpack.c.h.b16 %v214
        %v255 = vunpack.c.l.b16 %v215
        %v256 = vunpack.c.h.b16 %v215
        %v257 = vunpack.c.l.b16 %v216
        %v258 = vunpack.c.h.b16 %v216
        %v259 = vpack.c.b16 %v245, %v243
        %v260 = vpack.c.b16 %v246, %v244
        %v261 = vpack.c.b16 %v249, %v247
        %v262 = vpack.c.b16 %v250, %v248
        %v263 = vpack.c.b16 %v253, %v251
        %v264 = vpack.c.b16 %v254, %v252
        %v265 = vpack.c.b16 %v257, %v255
        %v266 = vpack.c.b16 %v258, %v256
        %vm275 = vcmask 523264
        %v277 = vsel %vm275, %v222, 0
        %v280 = vsel %vm275, %v223, 0
        %282 = vmatprep.subr.bf16.mxu0 %v260
        %283 = vmatpush1.bf16.msra.mxu0 %v259
        %284 = vmatprep.subr.bf16.mxu0 %v262
        %285 = vmatpush1.bf16.msra.mxu0 %v261
        %286 = vmatprep.subr.bf16.mxu0 %v264
        %287 = vmatpush1.bf16.msra.mxu0 %v263
        %288 = vmatprep.subr.bf16.mxu0 %v266
        %289 = vmatpush1.bf16.msra.mxu0 %v265
        %290 = vmatprep.subr.bf16.mxu0 0
        %291 = vmatpush1.bf16.msra.mxu0 0
        %292 = vmatprep.subr.bf16.mxu0 0
        %293 = vmatpush1.bf16.msra.mxu0 0
        %294 = vmatprep.subr.bf16.mxu0 0
        %295 = vmatpush1.bf16.msra.mxu0 0
        %296 = vmatprep.subr.bf16.mxu0 0
        %297 = vmatpush1.bf16.msra.mxu0 0
        %298 = vmatprep.subr.bf16.mxu0 0
        %299 = vmatpush1.bf16.msra.mxu0 0
        %300 = vmatprep.subr.bf16.mxu0 0
        %301 = vmatpush1.bf16.msra.mxu0 0
        %302 = vmatprep.subr.bf16.mxu0 0
        %303 = vmatpush1.bf16.msra.mxu0 0
        %304 = vmatprep.subr.bf16.mxu0 0
        %305 = vmatpush1.bf16.msra.mxu0 0
        %306 = vmatprep.subr.bf16.mxu0 0
        %307 = vmatpush1.bf16.msra.mxu0 0
        %308 = vmatprep.subr.bf16.mxu0 0
        %309 = vmatpush1.bf16.msra.mxu0 0
        %310 = vmatprep.subr.bf16.mxu0 0
        %311 = vmatpush1.bf16.msra.mxu0 0
        %312 = vmatprep.subr.bf16.mxu0 0
        %313 = vmatpush1.bf16.msra.mxu0 0
        %314 = vmatprep.mubr.bf16.mxu0 0
        %315 = vmatmul.mubr.bf16.gmra.mrb[0].mxu0 %v277
        %v316 = vpop.f32.mrb[0].mxu0
        %v317 = vadd.f32 %v228, %v316
        %v318 = vpop.f32.mrb[0].mxu0
        %v319 = vadd.f32 %v232, %v318
        %v320 = vpop.f32.mrb[0].mxu0
        %v321 = vadd.f32 %v228, %v320
        %v322 = vpop.f32.mrb[0].mxu0
        %v323 = vadd.f32 %v232, %v322
        %324 = vmatprep.mubr.bf16.mxu0 0
        %325 = vmatmul.mubr.bf16.gmra.mrb[0].mxu0 %v280
        %v326 = vpop.f32.mrb[0].mxu0
        %v327 = vadd.f32 %v228, %v326
        %v328 = vpop.f32.mrb[0].mxu0
        %v329 = vadd.f32 %v232, %v328
        %v330 = vpop.f32.mrb[0].mxu0
        %v331 = vadd.f32 %v228, %v330
        %v332 = vpop.f32.mrb[0].mxu0
        %v333 = vadd.f32 %v232, %v332
        %334 = vdwg.mxu0
        %v335 = vmax.f32 %v317, 0.0
        %v336 = vmax.f32 %v319, 0.0
        %v337 = vmax.f32 %v321, 0.0
        %v338 = vmax.f32 %v323, 0.0
        %v339 = vmax.f32 %v327, 0.0
        %v340 = vmax.f32 %v329, 0.0
        %v341 = vmax.f32 %v331, 0.0
        %v342 = vmax.f32 %v333, 0.0
        %v343 = vmax.f32 %v335, %v336
        %v344 = vmax.f32 %v337, %v338
        %v345 = vmax.f32 %v339, %v340
        %v346 = vmax.f32 %v341, %v342
        %351 = vrot.lane.b32.xlu0 %v343, 64
        %v352 = vpop.permute.xlu0 %351
        %353 = vrot.lane.b32.xlu0 %v344, 64
        %v354 = vpop.permute.xlu0 %353
        %355 = vrot.lane.b32.xlu0 %v345, 64
        %v356 = vpop.permute.xlu0 %355
        %357 = vrot.lane.b32.xlu0 %v346, 64
        %v358 = vpop.permute.xlu0 %357
        %v363 = vmax.f32 %v343, %v352
        %v364 = vmax.f32 %v344, %v354
        %v365 = vmax.f32 %v345, %v356
        %v366 = vmax.f32 %v346, %v358
        %371 = vrot.lane.b32.xlu0 %v363, 96
        %v372 = vpop.permute.xlu0 %371
        %373 = vrot.lane.b32.xlu0 %v364, 96
        %v374 = vpop.permute.xlu0 %373
        %375 = vrot.lane.b32.xlu0 %v365, 96
        %v376 = vpop.permute.xlu0 %375
        %377 = vrot.lane.b32.xlu0 %v366, 96
        %v378 = vpop.permute.xlu0 %377
        %v383 = vmax.f32 %v363, %v372
        %v384 = vmax.f32 %v364, %v374
        %v385 = vmax.f32 %v365, %v376
        %v386 = vmax.f32 %v366, %v378
        %vm387 = vcmask 261120
        %388 = vst.msk [vmem:[%s206] sm:$0xff] %vm387, %v383
        %389 = vst.msk [vmem:[%s206 + $0x8] sm:$0xff] %vm387, %v384
        %390 = vst.msk [vmem:[%s206 + $0x10] sm:$0xff] %vm387, %v385
        %391 = vst.msk [vmem:[%s206 + $0x18] sm:$0xff] %vm387, %v386
        %s392 = smul.u32 4, %s18
        %p393 = scmp.lt.s32.totalorder %s392, 7
        %s394 = scalar_select %p393, %s392, 7
        %s395 = smul.addr %s394, 8
        %s396 = scalar_lea.vmem %s3, %s395
        // Predicated region
        $region41: #{tpu_custom_call.1} parent=31 // pred_check
          %p397 = pneg %p104
        $region42: #{tpu_custom_call.1} parent=31 // pred_check_branch
          %399 = sbr.rel (%p397) target = $region44
        $region43: #{tpu_custom_call.1} parent=31 // pred_region
          %s400 = smul.u32 4, %s18
        $region44: #{tpu_custom_call.1} parent=31 // pred_fallthru
          _
      $region32: #{tpu_custom_call.1} parent=5 // pred_fallthru
        _
      %p401 = scmp.le.s32.totalorder 2, %s13
      // Predicated region
      $region45: #{tpu_custom_call.1} parent=5 // pred_check
        %p402 = pneg %p401
      $region46: #{tpu_custom_call.1} parent=5 // pred_check_branch
        %404 = sbr.rel (%p402) target = $region48
      $region47: #{tpu_custom_call.1} parent=5 // pred_region
        %s405 = ssub.s32 %s13, 2
        // Predicated region
        $region49: #{tpu_custom_call.1} parent=47 // pred_check
          %p406 = pneg %p110
        $region50: #{tpu_custom_call.1} parent=47 // pred_check_branch
          %408 = sbr.rel (%p406) target = $region52
        $region51: #{tpu_custom_call.1} parent=47 // pred_region
          %s409 = smul.u32 4, %s19
          %p410 = scmp.lt.s32.totalorder %s409, 7
          %s411 = scalar_select %p410, %s409, 7
          %s412 = smul.addr %s411, 8
          %s413 = scalar_lea.vmem %s3, %s412
        $region52: #{tpu_custom_call.1} parent=47 // pred_fallthru
          _
      $region48: #{tpu_custom_call.1} parent=5 // pred_fallthru
        _
    $region6: #{tpu_custom_call.1} parent=1 // loop_footer
      %s17 = sadd.s32 1, %s13
    $region7: #{tpu_custom_call.1} parent=1 // loop_footer_branch
      %12 = sbr.rel target = $region3
    $region8: #{tpu_custom_call.1} parent=1 // loop_exit
      _
    %414 = vsyncpa [#allocation3], 1
    %s415 = scalar_lea.sflag [#allocation3], 1
    %416 = vsyncpa %s415, 1
    %417 = vsyncpa [#allocation5], 1

</llo_original>
